<compile_context>
chip_gen: v7x
topology: tpu7x:2x2x1
jax: 0.10.0
libtpu: 0.0.40
codegen_flags: <defaults>
</compile_context>

<pallas_src>
import math

import jax
import jax.numpy as jnp
from jax import lax
from jax.experimental import pallas as pl
from jax.experimental.pallas import tpu as pltpu


def _round_up(x, m):
    return ((x + m - 1) // m) * m


def _resident_spec(block_shape, index_map):
    """BlockSpec for a grid-invariant (VMEM-resident) block.

    Single-buffered when the installed Pallas supports pipeline_mode, avoiding
    a redundant second table buffer (frees VMEM that buys a larger row tile).
    """
    if hasattr(pl, "Buffered"):
        try:
            return pl.BlockSpec(block_shape, index_map,
                                pipeline_mode=pl.Buffered(1))
        except TypeError:
            pass
    return pl.BlockSpec(block_shape, index_map)


# ---------------------------------------------------------------------------
# Kernel 1 (runs once per weight update): fused table  T = emb @ W^T + b
# ---------------------------------------------------------------------------
_TRANS_B_DIMS = (((1,), (1,)), ((), ()))  # contract emb dim 1 with w dim 1 (== emb @ w.T)


def _fuse_table_kernel(emb_ref, w_ref, b_ref, o_ref):
    acc = lax.dot_general(emb_ref[...], w_ref[...], _TRANS_B_DIMS,
                          preferred_element_type=jnp.float32)
    o_ref[...] = (acc + b_ref[...]).astype(o_ref.dtype)


def _fuse_table(emb, w, b, *, out_dtype=jnp.bfloat16):
    """emb: [L, H], w: [Hout, H] (PyTorch [out, in]), b: [Hout].

    Returns T: [Lp, Hp] with Lp = roundup(L, 128), Hp = roundup(Hout, 128).
    Padded rows / columns are never consumed by the forward path.
    """
    L, H = emb.shape
    Hout = w.shape[0]
    Lp = _round_up(L, 128)   # lane-aligned contraction K for the one-hot gather
    Hp = _round_up(Hout, 128)  # lane-dense output stores in the forward kernel
    emb_p = jnp.pad(emb, ((0, Lp - L), (0, 0))) if Lp != L else emb
    w_p = jnp.pad(w, ((0, Hp - Hout), (0, 0))) if Hp != Hout else w
    b_p = jnp.pad(b, (0, Hp - Hout)) if Hp != Hout else b

    est = 2 * (Lp * H + Hp * H + Hp + Lp * Hp) * 4
    vmem_limit = int(min(48 << 20, max(32 << 20, 2 * est)))
    # TODO(synk): tile this as a standard (i,j,k) matmul once H grows past ~2K
    # so the [Hp, H] weight block does not blow VMEM (runs once per weight
    # update, so grid=(1,) is fine for typical n_hid).
    return pl.pallas_call(
        _fuse_table_kernel,
        out_shape=jax.ShapeDtypeStruct((Lp, Hp), out_dtype),
        grid_spec=pltpu.PrefetchScalarGridSpec(
            num_scalar_prefetch=0,
            grid=(1,),
            in_specs=[
                pl.BlockSpec((Lp, H), lambda i: (0, 0)),   # sinusoid table (full)
                pl.BlockSpec((Hp, H), lambda i: (0, 0)),   # weight [out, in] (full)
                pl.BlockSpec((1, Hp), lambda i: (0, 0)),   # bias row
            ],
            out_specs=pl.BlockSpec((Lp, Hp), lambda i: (0, 0)),
        ),
        compiler_params=pltpu.CompilerParams(
            dimension_semantics=("arbitrary",),
            vmem_limit_bytes=vmem_limit),
    )(emb_p, w_p, b_p.reshape(1, Hp))


# ---------------------------------------------------------------------------
# Kernel 2 (forward): out[r] = T[t[r]] via exact one-hot @ T on large row tiles
# ---------------------------------------------------------------------------
def _gather_rows_kernel(t_ref, tab_ref, o_ref):
    idx = t_ref[...]                                        # [TM, 1] int32
    tm = idx.shape[0]
    lp = tab_ref.shape[0]
    lane = lax.broadcasted_iota(jnp.int32, (tm, lp), 1)     # [TM, Lp]
    onehot = (lane == idx).astype(tab_ref.dtype)            # exact 0/1 selector (bf16)
    o_ref[...] = jnp.dot(onehot, tab_ref[...],
                         preferred_element_type=jnp.float32).astype(o_ref.dtype)


def _pick_tm(n_rows, lp, hp, tab_itemsize, out_itemsize,
             vmem_budget=24 * 1024 * 1024):
    """VMEM-aware row-tile selection (conservative for v7x's 64 MiB VMEM)."""
    table_bytes = lp * hp * tab_itemsize                 # resident, single buffer
    avail = max(vmem_budget - table_bytes, 1 << 20)
    # Per-row VMEM: double-buffered output + double-buffered index + one-hot/iota.
    per_row = 2 * hp * out_itemsize + 2 * 4 + lp * (2 + 4)
    tm = avail // per_row
    tm = max(256, min(4096, tm))
    # Keep the row grid long enough to shard across TensorCores (v7x megacore).
    if n_rows >= 8 * 256:
        tm = min(tm, _round_up(pl.cdiv(n_rows, 8), 256))
    # Never exceed the (sublane-rounded) number of rows.
    tm = min(tm, _round_up(n_rows, 8))
    tm = max(8, (tm // 8) * 8)
    return int(tm)


def _gather_rows(table, t_flat, *, tm=None, out_dtype=jnp.float32):
    """table: [Lp, Hp] (VMEM-resident), t_flat: [N] int32 -> [N, Hp] out_dtype."""
    Lp, Hp = table.shape
    N = t_flat.shape[0]
    tab_bytes = jnp.dtype(table.dtype).itemsize
    out_bytes = jnp.dtype(out_dtype).itemsize
    if tm is None:
        tm = _pick_tm(N, Lp, Hp, tab_bytes, out_bytes)
    tm = int(tm)

    t2d = t_flat.reshape(N, 1)
    grid = (pl.cdiv(N, tm),)   # ragged last tile handled by Pallas: no host pad/slice
    cost = pl.CostEstimate(
        flops=2 * N * Lp * Hp,
        transcendentals=0,
        bytes_accessed=N * 4 + Lp * Hp * tab_bytes + N * Hp * out_bytes,
    )
    est = (Lp * Hp * tab_bytes          # resident table (single buffer)
           + 2 * tm * Hp * out_bytes    # double-buffered output tiles
           + 2 * tm * 4                 # double-buffered index tiles
           + tm * Lp * (2 + 4))         # one-hot + iota working set
    vmem_limit = int(min(48 << 20, max(32 << 20, 2 * est)))

    return pl.pallas_call(
        _gather_rows_kernel,
        out_shape=jax.ShapeDtypeStruct((N, Hp), out_dtype),
        grid_spec=pltpu.PrefetchScalarGridSpec(
            num_scalar_prefetch=0,
            grid=grid,
            in_specs=[
                pl.BlockSpec((tm, 1), lambda i: (i, 0)),      # index tile
                _resident_spec((Lp, Hp), lambda i: (0, 0)),   # fused table, resident
            ],
            out_specs=pl.BlockSpec((tm, Hp), lambda i: (i, 0)),
        ),
        compiler_params=pltpu.CompilerParams(
            dimension_semantics=("parallel",),
            vmem_limit_bytes=vmem_limit),
        cost_estimate=cost,
    )(t2d, table)


# ---------------------------------------------------------------------------
# Module-equivalent wrapper
# ---------------------------------------------------------------------------
_SMALL_N_FAST_PATH = 512  # below this, pallas_call launch overhead > the work


def make_rel_temporal_encoding_params(n_hid, max_len=100, key=None):
    """Build the sinusoidal table, Linear params, and the fused lookup table."""
    if key is None:
        key = jax.random.PRNGKey(0)
    # Sinusoidal table (matches the torch construction).
    position = jnp.arange(0.0, max_len, dtype=jnp.float32)[:, None]            # [L,1]
    div_term = jnp.exp(
        jnp.arange(0, n_hid, 2, dtype=jnp.float32) * -(math.log(10000.0) / n_hid)
    )                                                                           # [H/2]
    emb = jnp.zeros((max_len, n_hid), dtype=jnp.float32)
    emb = emb.at[:, 0::2].set(jnp.sin(position * div_term) / math.sqrt(n_hid))
    emb = emb.at[:, 1::2].set(jnp.cos(position * div_term) / math.sqrt(n_hid))
    # Linear(n_hid, n_hid): weight [out, in], bias [out] — PyTorch-style uniform init.
    kw, kb = jax.random.split(key)
    bound = 1.0 / math.sqrt(n_hid)
    w = jax.random.uniform(kw, (n_hid, n_hid), jnp.float32, -bound, bound)
    b = jax.random.uniform(kb, (n_hid,), jnp.float32, -bound, bound)
    # Fused lookup table (bf16, row/col padded) — one small Pallas matmul per
    # weight update instead of an [N, H] x [H, H] matmul on every forward call.
    table = _fuse_table(emb, w, b)                                              # [Lp, Hp]
    return {"emb": emb, "w": w, "b": b, "table": table,
            "n_hid": n_hid, "max_len": max_len}


def rel_temporal_encoding(params, x, t, *, force_pallas=False, tm=None):
    """Pallas implementation of RelTemporalEncoding.forward(x, t) = lin(emb(t)).

    x : unused (kept for signature parity with the PyTorch module)
    t : int array of arbitrary shape, values in [0, max_len)
    returns: float32 array of shape t.shape + (n_hid,)
    """
    del x  # forward() never uses x
    table = params["table"]
    H = params["n_hid"]
    max_len = params["max_len"]

    t_flat = jnp.reshape(t, (-1,)).astype(jnp.int32)
    # PyTorch nn.Embedding errors on out-of-range indices; we clamp instead.
    t_flat = jnp.clip(t_flat, 0, max_len - 1)
    N = t_flat.shape[0]
    if N == 0:  # guard: empty index set -> empty output, no zero-size grid
        return jnp.zeros(t.shape + (H,), jnp.float32)

    if N < _SMALL_N_FAST_PATH and not force_pallas:
        # Tiny-N fast path: plain XLA gather beats kernel launch overhead.
        out = jnp.take(table, t_flat, axis=0)[:, :H].astype(jnp.float32)
    else:
        out = _gather_rows(table, t_flat, tm=tm)[:, :H]      # [N, H] f32
    return out.reshape(t.shape + (H,))


# ---------------------------------------------------------------------------
# Demo / self-check
# ---------------------------------------------------------------------------
if __name__ == "__main__":
    n_hid = 32
    max_len = 100
    batch, seq = 2, 8

    key = jax.random.PRNGKey(0)
    k_params, k_x, k_t, k_t2 = jax.random.split(key, 4)

    params = make_rel_temporal_encoding_params(n_hid, max_len, key=k_params)

    # x is unused by the forward pass but constructed for signature parity.
    x = jax.random.normal(k_x, (batch, seq, n_hid), dtype=jnp.float32)
    t = jax.random.randint(k_t, (batch, seq), 0, max_len, dtype=jnp.int32)

    def ref_fn(t_arr):
        # Pure-JAX reference: lin(emb(t)) in f32.
        return params["emb"][t_arr] @ params["w"].T + params["b"]

    # bf16 fused table -> relax tolerance vs the f32 reference.
    ATOL, RTOL = 1e-2, 2e-2

    # 1) Pallas gather kernel on the small demo shape (force the kernel path).
    out = rel_temporal_encoding(params, x, t, force_pallas=True)
    out = jax.block_until_ready(out)
    assert out.shape == (batch, seq, n_hid)
    assert jnp.allclose(out, ref_fn(t), atol=ATOL, rtol=RTOL), "pallas path mismatch"

    # 2) Small-N fast path (plain gather) must agree too.
    out_fast = jax.block_until_ready(rel_temporal_encoding(params, x, t))
    assert jnp.allclose(out_fast, ref_fn(t), atol=ATOL, rtol=RTOL), "fast path mismatch"

    # 3) Larger ragged N: multi-step "parallel" row grid + ragged last tile.
    t_big = jax.random.randint(k_t2, (2500,), 0, max_len, dtype=jnp.int32)
    out_big = jax.block_until_ready(rel_temporal_encoding(params, None, t_big))
    assert out_big.shape == (2500, n_hid)
    assert jnp.allclose(out_big, ref_fn(t_big), atol=ATOL, rtol=RTOL), "large-N mismatch"

    print("KERNEL_OK")
</pallas_src>

<mosaic_0001>
module attributes {stable_mosaic.version = 11 : i64} {
  func.func @_fuse_table_kernel(%arg0: i32, %arg1: memref<128x32xf32, #tpu.memory_space<vmem>>, %arg2: memref<128x32xf32, #tpu.memory_space<vmem>>, %arg3: memref<1x128xf32, #tpu.memory_space<vmem>>, %arg4: memref<128x128xbf16, #tpu.memory_space<vmem>>) attributes {dimension_semantics = [#tpu.dimension_semantics<arbitrary>], iteration_bounds = array<i64: 1>, scalar_prefetch = 0 : i64, scratch_operands = 0 : i64, tpu.core_type = #tpu.core_type<tc>, window_params = [{pipeline_mode = #tpu.pipeline_mode<synchronous>, transform_indices = @transform_0, window_bounds = array<i64: 128, 32>}, {pipeline_mode = #tpu.pipeline_mode<synchronous>, transform_indices = @transform_1, window_bounds = array<i64: 128, 32>}, {pipeline_mode = #tpu.pipeline_mode<synchronous>, transform_indices = @transform_2, window_bounds = array<i64: 1, 128>}, {pipeline_mode = #tpu.pipeline_mode<synchronous>, transform_indices = @transform_3, window_bounds = array<i64: 128, 128>}]} {
    %c0 = arith.constant 0 : index
    %c0_0 = arith.constant 0 : index
    %0 = vector.load %arg1[%c0, %c0_0] : memref<128x32xf32, #tpu.memory_space<vmem>>, vector<128x32xf32>
    %c0_1 = arith.constant 0 : index
    %c0_2 = arith.constant 0 : index
    %1 = vector.load %arg2[%c0_1, %c0_2] : memref<128x32xf32, #tpu.memory_space<vmem>>, vector<128x32xf32>
    %cst = arith.constant dense<0.000000e+00> : vector<128x128xf32>
    %2 = tpu.matmul %0, %1, %cst {dimension_numbers = #tpu.dot_dimension_numbers<[1], [1], [0], [0], [0, 0, 1, 0], [], []>} : vector<128x32xf32>, vector<128x32xf32>, vector<128x128xf32> -> vector<128x128xf32>
    %c0_3 = arith.constant 0 : index
    %c0_4 = arith.constant 0 : index
    %3 = vector.load %arg3[%c0_3, %c0_4] : memref<1x128xf32, #tpu.memory_space<vmem>>, vector<1x128xf32>
    %4 = vector.broadcast %3 : vector<1x128xf32> to vector<128x128xf32>
    %5 = arith.addf %2, %4 : vector<128x128xf32>
    %6 = arith.truncf %5 : vector<128x128xf32> to vector<128x128xbf16>
    %c0_5 = arith.constant 0 : index
    %c0_6 = arith.constant 0 : index
    %7 = vector.load %arg4[%c0_5, %c0_6] : memref<128x128xbf16, #tpu.memory_space<vmem>>, vector<128x128xbf16>
    tpu.vector_store %arg4[%c0_5, %c0_6], %6 {strides = array<i32>} : memref<128x128xbf16, #tpu.memory_space<vmem>>, vector<128x128xbf16>,
    return
  }
  func.func @transform_0(%arg0: i32) -> (i32, i32) {
    %c0_i32 = arith.constant 0 : i32
    %c0_i32_0 = arith.constant 0 : i32
    %c0_i32_1 = arith.constant 0 : i32
    return %c0_i32, %c0_i32_0 : i32, i32
  }
  func.func @transform_1(%arg0: i32) -> (i32, i32) {
    %c0_i32 = arith.constant 0 : i32
    %c0_i32_0 = arith.constant 0 : i32
    %c0_i32_1 = arith.constant 0 : i32
    return %c0_i32, %c0_i32_0 : i32, i32
  }
  func.func @transform_2(%arg0: i32) -> (i32, i32) {
    %c0_i32 = arith.constant 0 : i32
    %c0_i32_0 = arith.constant 0 : i32
    %c0_i32_1 = arith.constant 0 : i32
    return %c0_i32, %c0_i32_0 : i32, i32
  }
  func.func @transform_3(%arg0: i32) -> (i32, i32) {
    %c0_i32 = arith.constant 0 : i32
    %c0_i32_0 = arith.constant 0 : i32
    %c0_i32_1 = arith.constant 0 : i32
    return %c0_i32, %c0_i32_0 : i32, i32
  }
}

</mosaic_0001>

<llo_original>
// kernel: tpu_custom_call.1
$region0: #{tpu_custom_call.1}
  #allocation0 [shape = 'u32[]', space=smem, size = 0x4, offset = 0x4, fixed_abs, tag = 'smem constant byte address 0x4 - core index']
  #allocation1 [shape = 'u32[144,128]{1,0:T(1,128)}', space=vmem, size = 0x12000, scoped, tag = 'internal scratch']
  %s0 = inlined_call_operand.vmem [shape: f32[128,32], index: 0, kind: input, shape index: {}]
  %s1 = inlined_call_operand.vmem [shape: f32[128,32], index: 1, kind: input, shape index: {}]
  %s2 = inlined_call_operand.vmem [shape: f32[1,128], index: 2, kind: input, shape index: {}]
  %s3 = inlined_call_operand.hbm [shape: bf16[128,128], index: 3, kind: output, shape index: {}]
  %s4 = sld [smem:[#allocation0]]
  $region22: #{tpu_custom_call.1} parent=0
    _
  %s6 = ssub.s32 1, %s4
  %s7 = scalar_select 0, %s6, %s4
  $region1: #{tpu_custom_call.1} parent=0
    #allocation2 [shape = 'u8[32768]{0}', space=vmem, size = 0x8000, scoped, tag = 'output window, operand 0, single buffered']
    #allocation3 [shape = 's32[1]{0}', space=sflag, size = 0x4, scoped, tag = 'scoped memory for tpu_custom_call.1']
    %8 = vsyncpa [#allocation3], 0
    // Predicated region
    $region2: #{tpu_custom_call.1} parent=1 // pred_check
      _
    $region3: #{tpu_custom_call.1} parent=1 // pred_check_branch
      %10 = sbr.rel (0) target = $region5
    $region4: #{tpu_custom_call.1} parent=1 // pred_region
      _
    $region5: #{tpu_custom_call.1} parent=1 // pred_fallthru
      _
    // Predicated region
    $region6: #{tpu_custom_call.1} parent=1 // pred_check
      _
    $region7: #{tpu_custom_call.1} parent=1 // pred_check_branch
      %12 = sbr.rel (0) target = $region9
    $region8: #{tpu_custom_call.1} parent=1 // pred_region
      _
    $region9: #{tpu_custom_call.1} parent=1 // pred_fallthru
      _
    // Predicated region
    $region10: #{tpu_custom_call.1} parent=1 // pred_check
      _
    $region11: #{tpu_custom_call.1} parent=1 // pred_check_branch
      %14 = sbr.rel (0) target = $region13
    $region12: #{tpu_custom_call.1} parent=1 // pred_region
      _
    $region13: #{tpu_custom_call.1} parent=1 // pred_fallthru
      _
    %v15 = vld [vmem:[%s0] sm:$0xff]
    %v16 = vld [vmem:[%s0 + $0x8] sm:$0xff]
    %v17 = vld [vmem:[%s0 + $0x10] sm:$0xff]
    %v18 = vld [vmem:[%s0 + $0x18] sm:$0xff]
    %v19 = vld [vmem:[%s0 + $0x20] sm:$0xff]
    %v20 = vld [vmem:[%s0 + $0x28] sm:$0xff]
    %v21 = vld [vmem:[%s0 + $0x30] sm:$0xff]
    %v22 = vld [vmem:[%s0 + $0x38] sm:$0xff]
    %v23 = vld [vmem:[%s0 + $0x40] sm:$0xff]
    %v24 = vld [vmem:[%s0 + $0x48] sm:$0xff]
    %v25 = vld [vmem:[%s0 + $0x50] sm:$0xff]
    %v26 = vld [vmem:[%s0 + $0x58] sm:$0xff]
    %v27 = vld [vmem:[%s0 + $0x60] sm:$0xff]
    %v28 = vld [vmem:[%s0 + $0x68] sm:$0xff]
    %v29 = vld [vmem:[%s0 + $0x70] sm:$0xff]
    %v30 = vld [vmem:[%s0 + $0x78] sm:$0xff]
    %v31 = vld [vmem:[%s1] sm:$0xff]
    %v32 = vld [vmem:[%s1 + $0x8] sm:$0xff]
    %v33 = vld [vmem:[%s1 + $0x10] sm:$0xff]
    %v34 = vld [vmem:[%s1 + $0x18] sm:$0xff]
    %v35 = vld [vmem:[%s1 + $0x20] sm:$0xff]
    %v36 = vld [vmem:[%s1 + $0x28] sm:$0xff]
    %v37 = vld [vmem:[%s1 + $0x30] sm:$0xff]
    %v38 = vld [vmem:[%s1 + $0x38] sm:$0xff]
    %v39 = vld [vmem:[%s1 + $0x40] sm:$0xff]
    %v40 = vld [vmem:[%s1 + $0x48] sm:$0xff]
    %v41 = vld [vmem:[%s1 + $0x50] sm:$0xff]
    %v42 = vld [vmem:[%s1 + $0x58] sm:$0xff]
    %v43 = vld [vmem:[%s1 + $0x60] sm:$0xff]
    %v44 = vld [vmem:[%s1 + $0x68] sm:$0xff]
    %v45 = vld [vmem:[%s1 + $0x70] sm:$0xff]
    %v46 = vld [vmem:[%s1 + $0x78] sm:$0xff]
    %v47 = vld [vmem:[%s2] sm:$0x1]
    %v49 = vlaneseq
    %v50 = vshrl.u32 %v49, 7
    %v51 = vsub.s32 0, %v50
    %v52 = vrot.slane %v47, %v51
    %vm54 = vcmask 261120
    %v56 = vsel %vm54, %v15, 0
    %v59 = vsel %vm54, %v16, 0
    %v62 = vsel %vm54, %v17, 0
    %v65 = vsel %vm54, %v18, 0
    %v68 = vsel %vm54, %v19, 0
    %v71 = vsel %vm54, %v20, 0
    %v74 = vsel %vm54, %v21, 0
    %v77 = vsel %vm54, %v22, 0
    %v80 = vsel %vm54, %v23, 0
    %v83 = vsel %vm54, %v24, 0
    %v86 = vsel %vm54, %v25, 0
    %v89 = vsel %vm54, %v26, 0
    %v92 = vsel %vm54, %v27, 0
    %v95 = vsel %vm54, %v28, 0
    %v98 = vsel %vm54, %v29, 0
    %v101 = vsel %vm54, %v30, 0
    %v104 = vsel %vm54, %v31, 0
    %v107 = vsel %vm54, %v32, 0
    %v110 = vsel %vm54, %v33, 0
    %v113 = vsel %vm54, %v34, 0
    %v116 = vsel %vm54, %v35, 0
    %v119 = vsel %vm54, %v36, 0
    %v122 = vsel %vm54, %v37, 0
    %v125 = vsel %vm54, %v38, 0
    %v128 = vsel %vm54, %v39, 0
    %v131 = vsel %vm54, %v40, 0
    %v134 = vsel %vm54, %v41, 0
    %v137 = vsel %vm54, %v42, 0
    %v140 = vsel %vm54, %v43, 0
    %v143 = vsel %vm54, %v44, 0
    %v146 = vsel %vm54, %v45, 0
    %v149 = vsel %vm54, %v46, 0
    %151 = vmatprep.subr.mxu0 0.0
    %152 = vmatpush1.xpose.msra.mxu0 %v104
    %153 = vmatprep.subr.mxu0 0.0
    %154 = vmatpush1.xpose.msra.mxu0 %v107
    %155 = vmatprep.subr.mxu0 0.0
    %156 = vmatpush1.xpose.msra.mxu0 %v110
    %157 = vmatprep.subr.mxu0 0.0
    %158 = vmatpush1.xpose.msra.mxu0 %v113
    %159 = vmatprep.subr.mxu0 0.0
    %160 = vmatpush1.xpose.msra.mxu0 %v116
    %161 = vmatprep.subr.mxu0 0.0
    %162 = vmatpush1.xpose.msra.mxu0 %v119
    %163 = vmatprep.subr.mxu0 0.0
    %164 = vmatpush1.xpose.msra.mxu0 %v122
    %165 = vmatprep.subr.mxu0 0.0
    %166 = vmatpush1.xpose.msra.mxu0 %v125
    %167 = vmatprep.subr.mxu0 0.0
    %168 = vmatpush1.xpose.msra.mxu0 %v128
    %169 = vmatprep.subr.mxu0 0.0
    %170 = vmatpush1.xpose.msra.mxu0 %v131
    %171 = vmatprep.subr.mxu0 0.0
    %172 = vmatpush1.xpose.msra.mxu0 %v134
    %173 = vmatprep.subr.mxu0 0.0
    %174 = vmatpush1.xpose.msra.mxu0 %v137
    %175 = vmatprep.subr.mxu0 0.0
    %176 = vmatpush1.xpose.msra.mxu0 %v140
    %177 = vmatprep.subr.mxu0 0.0
    %178 = vmatpush1.xpose.msra.mxu0 %v143
    %179 = vmatprep.subr.mxu0 0.0
    %180 = vmatpush1.xpose.msra.mxu0 %v146
    %181 = vmatprep.subr.mxu0 0.0
    %182 = vmatpush1.xpose.msra.mxu0 %v149
    %183 = vmatprep.subr.mxu0 0.0
    %184 = vmatpush1.xpose.msra.mxu0 0.0
    %185 = vmatprep.subr.mxu0 0.0
    %186 = vmatpush1.xpose.msra.mxu0 0.0
    %187 = vmatprep.subr.mxu0 0.0
    %188 = vmatpush1.xpose.msra.mxu0 0.0
    %189 = vmatprep.subr.mxu0 0.0
    %190 = vmatpush1.xpose.msra.mxu0 0.0
    %191 = vmatprep.subr.mxu0 0.0
    %192 = vmatpush1.xpose.msra.mxu0 0.0
    %193 = vmatprep.subr.mxu0 0.0
    %194 = vmatpush1.xpose.msra.mxu0 0.0
    %195 = vmatprep.subr.mxu0 0.0
    %196 = vmatpush1.xpose.msra.mxu0 0.0
    %197 = vmatprep.subr.mxu0 0.0
    %198 = vmatpush1.xpose.msra.mxu0 0.0
    %199 = vmatprep.subr.mxu0 0.0
    %200 = vmatpush1.xpose.msra.mxu0 0.0
    %201 = vmatprep.subr.mxu0 0.0
    %202 = vmatpush1.xpose.msra.mxu0 0.0
    %203 = vmatprep.subr.mxu0 0.0
    %204 = vmatpush1.xpose.msra.mxu0 0.0
    %205 = vmatprep.subr.mxu0 0.0
    %206 = vmatpush1.xpose.msra.mxu0 0.0
    %207 = vmatprep.subr.mxu0 0.0
    %208 = vmatpush1.xpose.msra.mxu0 0.0
    %209 = vmatprep.subr.mxu0 0.0
    %210 = vmatpush1.xpose.msra.mxu0 0.0
    %211 = vmatprep.subr.mxu0 0.0
    %212 = vmatpush1.xpose.msra.mxu0 0.0
    %213 = vmatprep.subr.mxu0 0.0
    %214 = vmatpush1.xpose.msra.mxu0 0.0
    %215 = vmatprep.mubr.f32.mxu0 0.0
    %216 = vmatmul.mubr.f32.gmra.mrb[0].mxu0 %v56
    %v217 = vpop.f32.mrb[0].mxu0
    %v218 = vadd.f32 %v52, %v217
    %v219 = vpop.f32.mrb[0].mxu0
    %220 = vmatprep.mubr.f32.mxu0 0.0
    %221 = vmatmul.mubr.f32.gmra.mrb[0].mxu0 %v59
    %v222 = vpop.f32.mrb[0].mxu0
    %v223 = vadd.f32 %v52, %v222
    %v224 = vpop.f32.mrb[0].mxu0
    %225 = vmatprep.mubr.f32.mxu0 0.0
    %226 = vmatmul.mubr.f32.gmra.mrb[0].mxu0 %v62
    %v227 = vpop.f32.mrb[0].mxu0
    %v228 = vadd.f32 %v52, %v227
    %v229 = vpop.f32.mrb[0].mxu0
    %230 = vmatprep.mubr.f32.mxu0 0.0
    %231 = vmatmul.mubr.f32.gmra.mrb[0].mxu0 %v65
    %v232 = vpop.f32.mrb[0].mxu0
    %v233 = vadd.f32 %v52, %v232
    %v234 = vpop.f32.mrb[0].mxu0
    %235 = vmatprep.mubr.f32.mxu0 0.0
    %236 = vmatmul.mubr.f32.gmra.mrb[0].mxu0 %v68
    %v237 = vpop.f32.mrb[0].mxu0
    %v238 = vadd.f32 %v52, %v237
    %v239 = vpop.f32.mrb[0].mxu0
    %240 = vmatprep.mubr.f32.mxu0 0.0
    %241 = vmatmul.mubr.f32.gmra.mrb[0].mxu0 %v71
    %v242 = vpop.f32.mrb[0].mxu0
    %v243 = vadd.f32 %v52, %v242
    %v244 = vpop.f32.mrb[0].mxu0
    %245 = vmatprep.mubr.f32.mxu0 0.0
    %246 = vmatmul.mubr.f32.gmra.mrb[0].mxu0 %v74
    %v247 = vpop.f32.mrb[0].mxu0
    %v248 = vadd.f32 %v52, %v247
    %v249 = vpop.f32.mrb[0].mxu0
    %250 = vmatprep.mubr.f32.mxu0 0.0
    %251 = vmatmul.mubr.f32.gmra.mrb[0].mxu0 %v77
    %v252 = vpop.f32.mrb[0].mxu0
    %v253 = vadd.f32 %v52, %v252
    %v254 = vpop.f32.mrb[0].mxu0
    %255 = vmatprep.mubr.f32.mxu0 0.0
    %256 = vmatmul.mubr.f32.gmra.mrb[0].mxu0 %v80
    %v257 = vpop.f32.mrb[0].mxu0
    %v258 = vadd.f32 %v52, %v257
    %v259 = vpop.f32.mrb[0].mxu0
    %260 = vmatprep.mubr.f32.mxu0 0.0
    %261 = vmatmul.mubr.f32.gmra.mrb[0].mxu0 %v83
    %v262 = vpop.f32.mrb[0].mxu0
    %v263 = vadd.f32 %v52, %v262
    %v264 = vpop.f32.mrb[0].mxu0
    %265 = vmatprep.mubr.f32.mxu0 0.0
    %266 = vmatmul.mubr.f32.gmra.mrb[0].mxu0 %v86
    %v267 = vpop.f32.mrb[0].mxu0
    %v268 = vadd.f32 %v52, %v267
    %v269 = vpop.f32.mrb[0].mxu0
    %270 = vmatprep.mubr.f32.mxu0 0.0
    %271 = vmatmul.mubr.f32.gmra.mrb[0].mxu0 %v89
    %v272 = vpop.f32.mrb[0].mxu0
    %v273 = vadd.f32 %v52, %v272
    %v274 = vpop.f32.mrb[0].mxu0
    %275 = vmatprep.mubr.f32.mxu0 0.0
    %276 = vmatmul.mubr.f32.gmra.mrb[0].mxu0 %v92
    %v277 = vpop.f32.mrb[0].mxu0
    %v278 = vadd.f32 %v52, %v277
    %v279 = vpop.f32.mrb[0].mxu0
    %280 = vmatprep.mubr.f32.mxu0 0.0
    %281 = vmatmul.mubr.f32.gmra.mrb[0].mxu0 %v95
    %v282 = vpop.f32.mrb[0].mxu0
    %v283 = vadd.f32 %v52, %v282
    %v284 = vpop.f32.mrb[0].mxu0
    %285 = vmatprep.mubr.f32.mxu0 0.0
    %286 = vmatmul.mubr.f32.gmra.mrb[0].mxu0 %v98
    %v287 = vpop.f32.mrb[0].mxu0
    %v288 = vadd.f32 %v52, %v287
    %v289 = vpop.f32.mrb[0].mxu0
    %290 = vmatprep.mubr.f32.mxu0 0.0
    %291 = vmatmul.mubr.f32.gmra.mrb[0].mxu0 %v101
    %v292 = vpop.f32.mrb[0].mxu0
    %v293 = vadd.f32 %v52, %v292
    %v294 = vpop.f32.mrb[0].mxu0
    %295 = vdwg.mxu0
    %v296 = vpack.c.bf16 %v223, %v218
    %v297 = vpack.c.bf16 %v233, %v228
    %v298 = vpack.c.bf16 %v243, %v238
    %v299 = vpack.c.bf16 %v253, %v248
    %v300 = vpack.c.bf16 %v263, %v258
    %v301 = vpack.c.bf16 %v273, %v268
    %v302 = vpack.c.bf16 %v283, %v278
    %v303 = vpack.c.bf16 %v293, %v288
    %v312 = vunpack.c.l.b16 %v296
    %v313 = vunpack.c.h.b16 %v296
    %v314 = vunpack.c.l.b16 %v297
    %v315 = vunpack.c.h.b16 %v297
    %v316 = vunpack.c.l.b16 %v298
    %v317 = vunpack.c.h.b16 %v298
    %v318 = vunpack.c.l.b16 %v299
    %v319 = vunpack.c.h.b16 %v299
    %v320 = vunpack.c.l.b16 %v300
    %v321 = vunpack.c.h.b16 %v300
    %v322 = vunpack.c.l.b16 %v301
    %v323 = vunpack.c.h.b16 %v301
    %v324 = vunpack.c.l.b16 %v302
    %v325 = vunpack.c.h.b16 %v302
    %v326 = vunpack.c.l.b16 %v303
    %v327 = vunpack.c.h.b16 %v303
    %v328 = vpack.c.b16 %v312, %v312
    %v329 = vpack.c.b16 %v313, %v313
    %v330 = vpack.c.b16 %v314, %v314
    %v331 = vpack.c.b16 %v315, %v315
    %v332 = vpack.c.b16 %v316, %v316
    %v333 = vpack.c.b16 %v317, %v317
    %v334 = vpack.c.b16 %v318, %v318
    %v335 = vpack.c.b16 %v319, %v319
    %v336 = vpack.c.b16 %v320, %v320
    %v337 = vpack.c.b16 %v321, %v321
    %v338 = vpack.c.b16 %v322, %v322
    %v339 = vpack.c.b16 %v323, %v323
    %v340 = vpack.c.b16 %v324, %v324
    %v341 = vpack.c.b16 %v325, %v325
    %v342 = vpack.c.b16 %v326, %v326
    %v343 = vpack.c.b16 %v327, %v327
    %360 = vst [vmem:[#allocation2] sm:$0xf] %v328
    %361 = vst [vmem:[#allocation2 + $0x4] sm:$0xf] %v329
    %362 = vst [vmem:[#allocation2 + $0x8] sm:$0xf] %v330
    %363 = vst [vmem:[#allocation2 + $0xc] sm:$0xf] %v331
    %364 = vst [vmem:[#allocation2 + $0x10] sm:$0xf] %v332
    %365 = vst [vmem:[#allocation2 + $0x14] sm:$0xf] %v333
    %366 = vst [vmem:[#allocation2 + $0x18] sm:$0xf] %v334
    %367 = vst [vmem:[#allocation2 + $0x1c] sm:$0xf] %v335
    %368 = vst [vmem:[#allocation2 + $0x20] sm:$0xf] %v336
    %369 = vst [vmem:[#allocation2 + $0x24] sm:$0xf] %v337
    %370 = vst [vmem:[#allocation2 + $0x28] sm:$0xf] %v338
    %371 = vst [vmem:[#allocation2 + $0x2c] sm:$0xf] %v339
    %372 = vst [vmem:[#allocation2 + $0x30] sm:$0xf] %v340
    %373 = vst [vmem:[#allocation2 + $0x34] sm:$0xf] %v341
    %374 = vst [vmem:[#allocation2 + $0x38] sm:$0xf] %v342
    %375 = vst [vmem:[#allocation2 + $0x3c] sm:$0xf] %v343
    // Predicated region
    $region14: #{tpu_custom_call.1} parent=1 // pred_check
      _
    $region15: #{tpu_custom_call.1} parent=1 // pred_check_branch
      %377 = sbr.rel (0) target = $region17
    $region16: #{tpu_custom_call.1} parent=1 // pred_region
      %s379 = ssub.s32 1024, 1024
      %380 = vsyncadd [#allocation3], %s379
      %s381 = sshll.u32 [#allocation2], 4
      %s382 = int_to_ptr.vmem [resolvable:$true] %s381
      %387 = dma.vmem_to_hbm [thread:$0]  %s382, 1024, %s3, [#allocation3], 64, 64, 4
    $region17: #{tpu_custom_call.1} parent=1 // pred_fallthru
      _
    // Predicated region
    $region18: #{tpu_custom_call.1} parent=1 // pred_check
      _
    $region19: #{tpu_custom_call.1} parent=1 // pred_check_branch
      %389 = sbr.rel (0) target = $region21
    $region20: #{tpu_custom_call.1} parent=1 // pred_region
      %390 = dma.done [#allocation3], 1024
    $region21: #{tpu_custom_call.1} parent=1 // pred_fallthru
      _
    %391 = vsyncpa [#allocation3], 1

</llo_original>
